<compile_context>
chip_gen: v5e
topology: v5e:2x2
jax: 0.10.0
libtpu: 0.0.40
codegen_flags: <defaults>
</compile_context>

<pallas_src>
import math

import jax
import jax.numpy as jnp
from jax import lax
from jax.experimental import pallas as pl
from jax.experimental.pallas import tpu as pltpu


# Tile targets for production shapes; at the tiny demo shapes every extent is below the
# target, so blocks equal the full array dims (always legal w.r.t. the (8, 128) rule).
_TQ_TARGET = 256        # query/sequence row tile
_TKV_TARGET = 512       # kv tile (flash reduction axis)
_TDFF_TARGET = 2048     # dff reduction tile for the FFN
_TM_TARGET = 512        # row tile (B*L) for the vocab head
_TN_TARGET = 512        # vocab tile for the vocab head
_VMEM_LIMIT = 48 * 1024 * 1024   # explicit scoped-VMEM budget (fits v5e/v6e/v7x)


def _pick_tile(extent, target, granularity=8):
    """Largest divisor of `extent` that is <= target and a multiple of `granularity`;
    falls back to the full extent (always a legal block)."""
    if extent <= target:
        return extent
    for cand in range(target, granularity - 1, -1):
        if extent % cand == 0 and cand % granularity == 0:
            return cand
    return extent


# ----------------------------------------------------------------------------
# In-kernel helpers
# ----------------------------------------------------------------------------
def _layer_norm(x, w, b, eps=1e-5):
    # matches torch.nn.LayerNorm (biased variance), f32 math
    mu = jnp.mean(x, axis=-1, keepdims=True)
    var = jnp.mean((x - mu) ** 2, axis=-1, keepdims=True)
    return (x - mu) * lax.rsqrt(var + eps) * w + b


# ----------------------------------------------------------------------------
# Pallas kernels
# ----------------------------------------------------------------------------
def qkv_kernel(x_ref, wq_ref, wk_ref, wv_ref, bq_ref, bk_ref, bv_ref,
               q_ref, k_ref, v_ref):
    """Full-width Q/K/V projection for one (batch, row-tile) step.

    Each projection is one lane-dense (tq, D) x (D, D) bf16 matmul (f32 accumulation);
    the result is scattered per head into the (B, H, L, dh) bf16 output layout with
    static lane slices (cheap data movement, no per-head matmuls).
    """
    n_heads = q_ref.shape[1]
    dh = q_ref.shape[3]
    x = x_ref[0].astype(jnp.bfloat16)                              # (tq, D)
    for out_ref, w_ref, b_ref in ((q_ref, wq_ref, bq_ref),
                                  (k_ref, wk_ref, bk_ref),
                                  (v_ref, wv_ref, bv_ref)):
        y = jnp.dot(x, w_ref[...], preferred_element_type=jnp.float32) + b_ref[...]
        y = y.astype(jnp.bfloat16)                                 # (tq, D)
        for h in range(n_heads):                                   # static unroll: layout scatter
            out_ref[0, h] = y[:, h * dh:(h + 1) * dh]


def attn_ln1_kernel(q_ref, k_ref, v_ref, wo_ref, bo_ref, x_ref, ln1w_ref, ln1b_ref,
                    o_ref, m_sc, l_sc, acc_sc):
    """Flash-style causal attention + out-proj + residual + LayerNorm1.

    Grid = (B, n_q_tiles, n_heads, n_kv_tiles).  kv is the innermost reduction axis
    (online softmax in scratch); heads are the next reduction axis, accumulating their
    out-projection contribution directly into the resident output block.
    """
    qi = pl.program_id(1)
    h = pl.program_id(2)
    kv = pl.program_id(3)
    n_heads = pl.num_programs(2)
    n_kv = pl.num_programs(3)

    tq = q_ref.shape[2]
    tkv = k_ref.shape[2]
    dh = q_ref.shape[3]
    scale = 1.0 / math.sqrt(dh)
    q_start = qi * tq
    kv_start = kv * tkv

    # Initialize the resident output block with the residual stream (first step only).
    @pl.when(jnp.logical_and(h == 0, kv == 0))
    def _():
        o_ref[0] = x_ref[0]

    # Reset online-softmax state at the start of each head's kv sweep.
    @pl.when(kv == 0)
    def _():
        m_sc[...] = jnp.full_like(m_sc, -jnp.inf)
        l_sc[...] = jnp.zeros_like(l_sc)
        acc_sc[...] = jnp.zeros_like(acc_sc)

    # Causal skip: this kv tile only contributes if it is not entirely above the diagonal.
    @pl.when(kv_start <= q_start + tq - 1)
    def _():
        q = q_ref[0, 0]                                            # (tq, dh)  bf16
        k = k_ref[0, 0]                                            # (tkv, dh) bf16
        v = v_ref[0, 0]                                            # (tkv, dh) bf16
        # scores = q @ k.T  (contract dh on both operands; no explicit transpose)
        s = lax.dot_general(q, k, (((1,), (1,)), ((), ())),
                            preferred_element_type=jnp.float32) * scale   # (tq, tkv) f32
        rows = q_start + lax.broadcasted_iota(jnp.int32, (tq, tkv), 0)
        cols = kv_start + lax.broadcasted_iota(jnp.int32, (tq, tkv), 1)
        s = jnp.where(cols <= rows, s, -1e30)

        m_prev = m_sc[...]
        m_new = jnp.maximum(m_prev, jnp.max(s, axis=-1, keepdims=True))
        alpha = jnp.exp(m_prev - m_new)
        p = jnp.exp(s - m_new)
        l_sc[...] = alpha * l_sc[...] + jnp.sum(p, axis=-1, keepdims=True)
        acc_sc[...] = alpha * acc_sc[...] + jnp.dot(p.astype(jnp.bfloat16), v,
                                                    preferred_element_type=jnp.float32)
        m_sc[...] = m_new

    # End of this head's kv sweep: normalize and accumulate its out-proj contribution.
    @pl.when(kv == n_kv - 1)
    def _():
        ctx = acc_sc[...] * pl.reciprocal(l_sc[...], approx=True)  # (tq, dh) f32
        o_ref[0] += jnp.dot(ctx.astype(jnp.bfloat16), wo_ref[0],
                            preferred_element_type=jnp.float32)    # += ctx_h @ Wo[h]

    # Last head, last kv tile: residual already inside o_ref -> add bias, LayerNorm1.
    @pl.when(jnp.logical_and(h == n_heads - 1, kv == n_kv - 1))
    def _():
        o_ref[0] = _layer_norm(o_ref[0] + bo_ref[...], ln1w_ref[...], ln1b_ref[...])


def ffn_ln2_kernel(x_ref, w1_ref, b1_ref, w2_ref, b2_ref, ln2w_ref, ln2b_ref, o_ref):
    """Feed-forward (linear->relu->linear) + residual + LayerNorm2, dff tiled as a reduction."""
    f = pl.program_id(2)
    n_f = pl.num_programs(2)
    x = x_ref[0]                                                   # (tq, D) f32

    @pl.when(f == 0)
    def _():
        o_ref[0] = x                                               # residual

    h = jnp.dot(x.astype(jnp.bfloat16), w1_ref[...],
                preferred_element_type=jnp.float32) + b1_ref[...]  # (tq, tdff)
    h = jnp.maximum(h, 0.0)
    o_ref[0] += jnp.dot(h.astype(jnp.bfloat16), w2_ref[...],
                        preferred_element_type=jnp.float32)        # += partial (tq, D)

    @pl.when(f == n_f - 1)
    def _():
        o_ref[0] = _layer_norm(o_ref[0] + b2_ref[...], ln2w_ref[...], ln2b_ref[...])


def head_kernel(x_ref, w_ref, o_ref):
    # logits tile = x_tile @ W_t_tile   (Linear, bias=False; W pre-transposed to (D, V))
    o_ref[...] = jnp.dot(x_ref[...], w_ref[...], preferred_element_type=jnp.float32)


# ----------------------------------------------------------------------------
# Wrappers
# ----------------------------------------------------------------------------
def qkv_proj_pallas(x, p, n_heads):
    B, L, D = x.shape
    dh = D // n_heads
    tq = _pick_tile(L, _TQ_TARGET, 8)
    nq = L // tq
    out_sds = jax.ShapeDtypeStruct((B, n_heads, L, dh), jnp.bfloat16)
    out_spec = pl.BlockSpec((1, n_heads, tq, dh), lambda b, qi: (b, 0, qi, 0))
    return pl.pallas_call(
        qkv_kernel,
        grid=(B, nq),
        out_shape=(out_sds, out_sds, out_sds),
        in_specs=[
            pl.BlockSpec((1, tq, D), lambda b, qi: (b, qi, 0)),    # x row tile (f32)
            pl.BlockSpec((D, D), lambda b, qi: (0, 0)),            # Wq (bf16, pre-transposed)
            pl.BlockSpec((D, D), lambda b, qi: (0, 0)),            # Wk
            pl.BlockSpec((D, D), lambda b, qi: (0, 0)),            # Wv
            pl.BlockSpec((1, D), lambda b, qi: (0, 0)),            # bq
            pl.BlockSpec((1, D), lambda b, qi: (0, 0)),            # bk
            pl.BlockSpec((1, D), lambda b, qi: (0, 0)),            # bv
        ],
        out_specs=(out_spec, out_spec, out_spec),
        compiler_params=pltpu.CompilerParams(
            dimension_semantics=("parallel", "parallel"),
            vmem_limit_bytes=_VMEM_LIMIT),
    )(x, p['wq'], p['wk'], p['wv'], p['bq'], p['bk'], p['bv'])


def attn_ln1_pallas(x, q, k, v, p, n_heads):
    B, L, D = x.shape
    dh = D // n_heads
    tq = _pick_tile(L, _TQ_TARGET, 8)
    tkv = _pick_tile(L, _TKV_TARGET, 8)
    nq, nkv = L // tq, L // tkv
    return pl.pallas_call(
        attn_ln1_kernel,
        grid=(B, nq, n_heads, nkv),
        out_shape=jax.ShapeDtypeStruct((B, L, D), jnp.float32),
        in_specs=[
            pl.BlockSpec((1, 1, tq, dh),  lambda b, qi, h, kv: (b, h, qi, 0)),  # Q tile
            pl.BlockSpec((1, 1, tkv, dh), lambda b, qi, h, kv: (b, h, kv, 0)),  # K tile
            pl.BlockSpec((1, 1, tkv, dh), lambda b, qi, h, kv: (b, h, kv, 0)),  # V tile
            pl.BlockSpec((1, dh, D),      lambda b, qi, h, kv: (h, 0, 0)),      # Wo[h]
            pl.BlockSpec((1, D),          lambda b, qi, h, kv: (0, 0)),         # bo
            pl.BlockSpec((1, tq, D),      lambda b, qi, h, kv: (b, qi, 0)),     # residual x
            pl.BlockSpec((1, D),          lambda b, qi, h, kv: (0, 0)),         # ln1w
            pl.BlockSpec((1, D),          lambda b, qi, h, kv: (0, 0)),         # ln1b
        ],
        out_specs=pl.BlockSpec((1, tq, D), lambda b, qi, h, kv: (b, qi, 0)),
        scratch_shapes=[
            pltpu.VMEM((tq, 1), jnp.float32),    # running max  m
            pltpu.VMEM((tq, 1), jnp.float32),    # running sum  l
            pltpu.VMEM((tq, dh), jnp.float32),   # running ctx accumulator
        ],
        compiler_params=pltpu.CompilerParams(
            dimension_semantics=("parallel", "parallel", "arbitrary", "arbitrary"),
            vmem_limit_bytes=_VMEM_LIMIT),
    )(q, k, v, p['wo'], p['bo'], x, p['ln1w'], p['ln1b'])


def ffn_ln2_pallas(x, p):
    B, L, D = x.shape
    dff = p['w1'].shape[1]
    tq = _pick_tile(L, _TQ_TARGET, 8)
    tdff = _pick_tile(dff, _TDFF_TARGET, 128)
    nq, nf = L // tq, dff // tdff
    return pl.pallas_call(
        ffn_ln2_kernel,
        grid=(B, nq, nf),
        out_shape=jax.ShapeDtypeStruct((B, L, D), jnp.float32),
        in_specs=[
            pl.BlockSpec((1, tq, D), lambda b, qi, f: (b, qi, 0)),
            pl.BlockSpec((D, tdff),  lambda b, qi, f: (0, f)),     # W1 dff tile
            pl.BlockSpec((1, tdff),  lambda b, qi, f: (0, f)),     # b1 dff tile
            pl.BlockSpec((tdff, D),  lambda b, qi, f: (f, 0)),     # W2 dff tile
            pl.BlockSpec((1, D),     lambda b, qi, f: (0, 0)),     # b2
            pl.BlockSpec((1, D),     lambda b, qi, f: (0, 0)),     # ln2w
            pl.BlockSpec((1, D),     lambda b, qi, f: (0, 0)),     # ln2b
        ],
        out_specs=pl.BlockSpec((1, tq, D), lambda b, qi, f: (b, qi, 0)),
        compiler_params=pltpu.CompilerParams(
            dimension_semantics=("parallel", "parallel", "arbitrary"),
            vmem_limit_bytes=_VMEM_LIMIT),
    )(x, p['w1'], p['b1'], p['w2'], p['b2'], p['ln2w'], p['ln2b'])


def head_pallas(h, head_w_t):
    B, L, D = h.shape
    V = head_w_t.shape[1]
    BL = B * L
    h2d = h.reshape(BL, D).astype(jnp.bfloat16)    # pre-cast: halve activation stream
    tm = _pick_tile(BL, _TM_TARGET, 8)
    tn = _pick_tile(V, _TN_TARGET, 128)
    try:
        w_spec = pl.BlockSpec((D, tn), lambda i, j: (0, j), pipeline_mode=pl.Buffered(3))
    except TypeError:   # older BlockSpec without pipeline_mode support
        w_spec = pl.BlockSpec((D, tn), lambda i, j: (0, j))
    logits = pl.pallas_call(
        head_kernel,
        grid=(BL // tm, V // tn),
        out_shape=jax.ShapeDtypeStruct((BL, V), jnp.float32),
        in_specs=[pl.BlockSpec((tm, D), lambda i, j: (i, 0)),
                  w_spec],
        out_specs=pl.BlockSpec((tm, tn), lambda i, j: (i, j)),
        compiler_params=pltpu.CompilerParams(
            dimension_semantics=("parallel", "parallel"),
            vmem_limit_bytes=_VMEM_LIMIT),
    )(h2d, head_w_t)
    return logits.reshape(B, L, V)


def ar_transformer_forward(idx, params, n_heads):
    """idx: (B, L) int32 token ids  ->  logits (B, L, vocab) float32."""
    B, L = idx.shape
    # Glue: embedding gather (data-dependent lookup) + positional add.
    h = params['tok_emb'][idx] + params['pos_emb'][None, :L, :]
    for lp in params['layers']:
        q, k, v = qkv_proj_pallas(h, lp, n_heads)
        h = attn_ln1_pallas(h, q, k, v, lp, n_heads)
        h = ffn_ln2_pallas(h, lp)
    return head_pallas(h, params['head_w_t'])


# ----------------------------------------------------------------------------
# Deterministic parameter init (synthetic weights, stored in kernel layout)
# ----------------------------------------------------------------------------
def init_params(key, vocab, seq_len, d_model, n_heads, n_layers):
    D = d_model
    dh = D // n_heads
    dff = 4 * D
    keys = jax.random.split(key, 3 + n_layers)

    def nrm(k, shape):
        return (0.02 * jax.random.normal(k, shape)).astype(jnp.float32)

    params = {
        'tok_emb': nrm(keys[0], (vocab, D)),
        'pos_emb': nrm(keys[1], (seq_len, D)),
        'head_w_t': nrm(keys[2], (vocab, D)).T.astype(jnp.bfloat16),   # (D, V) bf16
        'layers': [],
    }
    for i in range(n_layers):
        lk = jax.random.split(keys[3 + i], 10)
        wq, wk, wv, wo = (nrm(lk[j], (D, D)) for j in range(4))   # torch layout (out, in)
        bqkv = nrm(lk[4], (3 * D,))
        bo = nrm(lk[5], (D,))
        w1 = nrm(lk[6], (dff, D))
        w2 = nrm(lk[7], (D, dff))
        params['layers'].append({
            'wq': wq.T.astype(jnp.bfloat16),                       # (D_in, D_out) bf16
            'wk': wk.T.astype(jnp.bfloat16),
            'wv': wv.T.astype(jnp.bfloat16),
            'bq': bqkv[0 * D:1 * D].reshape(1, D),
            'bk': bqkv[1 * D:2 * D].reshape(1, D),
            'bv': bqkv[2 * D:3 * D].reshape(1, D),
            'wo': wo.T.reshape(n_heads, dh, D).astype(jnp.bfloat16),  # per-head rows of Wo.T
            'bo': bo.reshape(1, D),
            'ln1w': jnp.ones((1, D), jnp.float32),
            'ln1b': jnp.zeros((1, D), jnp.float32),
            'w1': w1.T.astype(jnp.bfloat16),                       # (D, 4D) bf16
            'b1': nrm(lk[8], (1, dff)),
            'w2': w2.T.astype(jnp.bfloat16),                       # (4D, D) bf16
            'b2': nrm(lk[9], (1, D)),
            'ln2w': jnp.ones((1, D), jnp.float32),
            'ln2b': jnp.zeros((1, D), jnp.float32),
        })
    return params


# ----------------------------------------------------------------------------
# Pure-JAX reference (f32 math on the same bf16-stored weights) for sanity check
# ----------------------------------------------------------------------------
def reference_forward(idx, params, n_heads):
    B, L = idx.shape
    x = params['tok_emb'][idx] + params['pos_emb'][None, :L, :]
    D = x.shape[-1]
    dh = D // n_heads
    mask = jnp.tril(jnp.ones((L, L), bool))
    f32 = lambda a: a.astype(jnp.float32)
    for p in params['layers']:
        q = (x @ f32(p['wq']) + p['bq']).reshape(B, L, n_heads, dh).transpose(0, 2, 1, 3)
        k = (x @ f32(p['wk']) + p['bk']).reshape(B, L, n_heads, dh).transpose(0, 2, 1, 3)
        v = (x @ f32(p['wv']) + p['bv']).reshape(B, L, n_heads, dh).transpose(0, 2, 1, 3)
        s = jnp.einsum('bhqd,bhkd->bhqk', q, k) / math.sqrt(dh)
        s = jnp.where(mask, s, -jnp.inf)
        a = jax.nn.softmax(s, axis=-1)
        o = jnp.einsum('bhqk,bhkd->bhqd', a, v).transpose(0, 2, 1, 3).reshape(B, L, D)
        o = o @ f32(p['wo']).reshape(D, D) + p['bo']
        x1 = _layer_norm(x + o, p['ln1w'], p['ln1b'])
        ff = jnp.maximum(x1 @ f32(p['w1']) + p['b1'], 0.0) @ f32(p['w2']) + p['b2']
        x = _layer_norm(x1 + ff, p['ln2w'], p['ln2b'])
    return x @ f32(params['head_w_t'])


# ----------------------------------------------------------------------------
if __name__ == "__main__":
    VOCAB, SEQ_LEN, D_MODEL, N_LAYERS, N_HEADS = 32, 8, 32, 2, 4
    B, L = 2, 8

    key = jax.random.PRNGKey(0)
    k_params, k_idx = jax.random.split(key)
    params = init_params(k_params, VOCAB, SEQ_LEN, D_MODEL, N_HEADS, N_LAYERS)
    idx = jax.random.randint(k_idx, (B, L), 0, VOCAB, dtype=jnp.int32)

    logits = jax.block_until_ready(ar_transformer_forward(idx, params, N_HEADS))
    assert logits.shape == (B, L, VOCAB), logits.shape

    ref = reference_forward(idx, params, N_HEADS)
    err = float(jnp.max(jnp.abs(logits - ref)))
    assert err < 2e-2, f"max abs diff vs reference: {err}"

    # TODO(synk): `generate()` (autoregressive multinomial sampling loop) is host-side
    # control flow and is not implemented as a kernel.
    print("KERNEL_OK")
</pallas_src>

<mosaic_0001>
module attributes {stable_mosaic.version = 11 : i64} {
  func.func @qkv_kernel(%arg0: i32, %arg1: i32, %arg2: memref<1x8x32xf32, #tpu.memory_space<vmem>>, %arg3: memref<32x32xbf16, #tpu.memory_space<vmem>>, %arg4: memref<32x32xbf16, #tpu.memory_space<vmem>>, %arg5: memref<32x32xbf16, #tpu.memory_space<vmem>>, %arg6: memref<1x32xf32, #tpu.memory_space<vmem>>, %arg7: memref<1x32xf32, #tpu.memory_space<vmem>>, %arg8: memref<1x32xf32, #tpu.memory_space<vmem>>, %arg9: memref<1x4x8x8xbf16, #tpu.memory_space<vmem>>, %arg10: memref<1x4x8x8xbf16, #tpu.memory_space<vmem>>, %arg11: memref<1x4x8x8xbf16, #tpu.memory_space<vmem>>) attributes {dimension_semantics = [#tpu.dimension_semantics<parallel>, #tpu.dimension_semantics<parallel>], iteration_bounds = array<i64: 2, 1>, scalar_prefetch = 0 : i64, scratch_operands = 0 : i64, tpu.core_type = #tpu.core_type<tc>, window_params = [{transform_indices = @transform_0, window_bounds = array<i64: 1, 8, 32>}, {pipeline_mode = #tpu.pipeline_mode<synchronous>, transform_indices = @transform_1, window_bounds = array<i64: 32, 32>}, {pipeline_mode = #tpu.pipeline_mode<synchronous>, transform_indices = @transform_2, window_bounds = array<i64: 32, 32>}, {pipeline_mode = #tpu.pipeline_mode<synchronous>, transform_indices = @transform_3, window_bounds = array<i64: 32, 32>}, {pipeline_mode = #tpu.pipeline_mode<synchronous>, transform_indices = @transform_4, window_bounds = array<i64: 1, 32>}, {pipeline_mode = #tpu.pipeline_mode<synchronous>, transform_indices = @transform_5, window_bounds = array<i64: 1, 32>}, {pipeline_mode = #tpu.pipeline_mode<synchronous>, transform_indices = @transform_6, window_bounds = array<i64: 1, 32>}, {transform_indices = @transform_7, window_bounds = array<i64: 1, 4, 8, 8>}, {transform_indices = @transform_8, window_bounds = array<i64: 1, 4, 8, 8>}, {transform_indices = @transform_9, window_bounds = array<i64: 1, 4, 8, 8>}]} {
    %c0 = arith.constant 0 : index
    %c0_0 = arith.constant 0 : index
    %c0_1 = arith.constant 0 : index
    %0 = vector.load %arg2[%c0, %c0_0, %c0_1] : memref<1x8x32xf32, #tpu.memory_space<vmem>>, vector<1x8x32xf32>
    %1 = vector.shape_cast %0 : vector<1x8x32xf32> to vector<8x32xf32>
    %2 = arith.truncf %1 : vector<8x32xf32> to vector<8x32xbf16>
    %c0_2 = arith.constant 0 : index
    %c0_3 = arith.constant 0 : index
    %3 = vector.load %arg3[%c0_2, %c0_3] : memref<32x32xbf16, #tpu.memory_space<vmem>>, vector<32x32xbf16>
    %cst = arith.constant dense<0.000000e+00> : vector<8x32xf32>
    %4 = tpu.matmul %2, %3, %cst {dimension_numbers = #tpu.dot_dimension_numbers<[1], [0], [0], [1], [0, 0, 1, 1], [], []>} : vector<8x32xbf16>, vector<32x32xbf16>, vector<8x32xf32> -> vector<8x32xf32>
    %c0_4 = arith.constant 0 : index
    %c0_5 = arith.constant 0 : index
    %5 = vector.load %arg6[%c0_4, %c0_5] : memref<1x32xf32, #tpu.memory_space<vmem>>, vector<1x32xf32>
    %6 = vector.broadcast %5 : vector<1x32xf32> to vector<8x32xf32>
    %7 = arith.addf %4, %6 : vector<8x32xf32>
    %8 = arith.truncf %7 : vector<8x32xf32> to vector<8x32xbf16>
    %9 = vector.extract_strided_slice %8 {offsets = [0, 0], sizes = [8, 8], strides = [1, 1]} : vector<8x32xbf16> to vector<8x8xbf16>
    %c0_6 = arith.constant 0 : index
    %c0_7 = arith.constant 0 : index
    %c0_8 = arith.constant 0 : index
    %c0_9 = arith.constant 0 : index
    %10 = vector.load %arg9[%c0_6, %c0_7, %c0_8, %c0_9] : memref<1x4x8x8xbf16, #tpu.memory_space<vmem>>, vector<1x1x8x8xbf16>
    %11 = vector.shape_cast %10 : vector<1x1x8x8xbf16> to vector<8x8xbf16>
    %12 = vector.shape_cast %9 : vector<8x8xbf16> to vector<1x1x8x8xbf16>
    tpu.vector_store %arg9[%c0_6, %c0_7, %c0_8, %c0_9], %12 {strides = array<i32>} : memref<1x4x8x8xbf16, #tpu.memory_space<vmem>>, vector<1x1x8x8xbf16>,
    %13 = vector.extract_strided_slice %8 {offsets = [0, 8], sizes = [8, 8], strides = [1, 1]} : vector<8x32xbf16> to vector<8x8xbf16>
    %c0_10 = arith.constant 0 : index
    %c1 = arith.constant 1 : index
    %c0_11 = arith.constant 0 : index
    %c0_12 = arith.constant 0 : index
    %14 = vector.load %arg9[%c0_10, %c1, %c0_11, %c0_12] : memref<1x4x8x8xbf16, #tpu.memory_space<vmem>>, vector<1x1x8x8xbf16>
    %15 = vector.shape_cast %14 : vector<1x1x8x8xbf16> to vector<8x8xbf16>
    %16 = vector.shape_cast %13 : vector<8x8xbf16> to vector<1x1x8x8xbf16>
    tpu.vector_store %arg9[%c0_10, %c1, %c0_11, %c0_12], %16 {strides = array<i32>} : memref<1x4x8x8xbf16, #tpu.memory_space<vmem>>, vector<1x1x8x8xbf16>,
    %17 = vector.extract_strided_slice %8 {offsets = [0, 16], sizes = [8, 8], strides = [1, 1]} : vector<8x32xbf16> to vector<8x8xbf16>
    %c0_13 = arith.constant 0 : index
    %c2 = arith.constant 2 : index
    %c0_14 = arith.constant 0 : index
    %c0_15 = arith.constant 0 : index
    %18 = vector.load %arg9[%c0_13, %c2, %c0_14, %c0_15] : memref<1x4x8x8xbf16, #tpu.memory_space<vmem>>, vector<1x1x8x8xbf16>
    %19 = vector.shape_cast %18 : vector<1x1x8x8xbf16> to vector<8x8xbf16>
    %20 = vector.shape_cast %17 : vector<8x8xbf16> to vector<1x1x8x8xbf16>
    tpu.vector_store %arg9[%c0_13, %c2, %c0_14, %c0_15], %20 {strides = array<i32>} : memref<1x4x8x8xbf16, #tpu.memory_space<vmem>>, vector<1x1x8x8xbf16>,
    %21 = vector.extract_strided_slice %8 {offsets = [0, 24], sizes = [8, 8], strides = [1, 1]} : vector<8x32xbf16> to vector<8x8xbf16>
    %c0_16 = arith.constant 0 : index
    %c3 = arith.constant 3 : index
    %c0_17 = arith.constant 0 : index
    %c0_18 = arith.constant 0 : index
    %22 = vector.load %arg9[%c0_16, %c3, %c0_17, %c0_18] : memref<1x4x8x8xbf16, #tpu.memory_space<vmem>>, vector<1x1x8x8xbf16>
    %23 = vector.shape_cast %22 : vector<1x1x8x8xbf16> to vector<8x8xbf16>
    %24 = vector.shape_cast %21 : vector<8x8xbf16> to vector<1x1x8x8xbf16>
    tpu.vector_store %arg9[%c0_16, %c3, %c0_17, %c0_18], %24 {strides = array<i32>} : memref<1x4x8x8xbf16, #tpu.memory_space<vmem>>, vector<1x1x8x8xbf16>,
    %c0_19 = arith.constant 0 : index
    %c0_20 = arith.constant 0 : index
    %25 = vector.load %arg4[%c0_19, %c0_20] : memref<32x32xbf16, #tpu.memory_space<vmem>>, vector<32x32xbf16>
    %cst_21 = arith.constant dense<0.000000e+00> : vector<8x32xf32>
    %26 = tpu.matmul %2, %25, %cst_21 {dimension_numbers = #tpu.dot_dimension_numbers<[1], [0], [0], [1], [0, 0, 1, 1], [], []>} : vector<8x32xbf16>, vector<32x32xbf16>, vector<8x32xf32> -> vector<8x32xf32>
    %c0_22 = arith.constant 0 : index
    %c0_23 = arith.constant 0 : index
    %27 = vector.load %arg7[%c0_22, %c0_23] : memref<1x32xf32, #tpu.memory_space<vmem>>, vector<1x32xf32>
    %28 = vector.broadcast %27 : vector<1x32xf32> to vector<8x32xf32>
    %29 = arith.addf %26, %28 : vector<8x32xf32>
    %30 = arith.truncf %29 : vector<8x32xf32> to vector<8x32xbf16>
    %31 = vector.extract_strided_slice %30 {offsets = [0, 0], sizes = [8, 8], strides = [1, 1]} : vector<8x32xbf16> to vector<8x8xbf16>
    %c0_24 = arith.constant 0 : index
    %c0_25 = arith.constant 0 : index
    %c0_26 = arith.constant 0 : index
    %c0_27 = arith.constant 0 : index
    %32 = vector.load %arg10[%c0_24, %c0_25, %c0_26, %c0_27] : memref<1x4x8x8xbf16, #tpu.memory_space<vmem>>, vector<1x1x8x8xbf16>
    %33 = vector.shape_cast %32 : vector<1x1x8x8xbf16> to vector<8x8xbf16>
    %34 = vector.shape_cast %31 : vector<8x8xbf16> to vector<1x1x8x8xbf16>
    tpu.vector_store %arg10[%c0_24, %c0_25, %c0_26, %c0_27], %34 {strides = array<i32>} : memref<1x4x8x8xbf16, #tpu.memory_space<vmem>>, vector<1x1x8x8xbf16>,
    %35 = vector.extract_strided_slice %30 {offsets = [0, 8], sizes = [8, 8], strides = [1, 1]} : vector<8x32xbf16> to vector<8x8xbf16>
    %c0_28 = arith.constant 0 : index
    %c1_29 = arith.constant 1 : index
    %c0_30 = arith.constant 0 : index
    %c0_31 = arith.constant 0 : index
    %36 = vector.load %arg10[%c0_28, %c1_29, %c0_30, %c0_31] : memref<1x4x8x8xbf16, #tpu.memory_space<vmem>>, vector<1x1x8x8xbf16>
    %37 = vector.shape_cast %36 : vector<1x1x8x8xbf16> to vector<8x8xbf16>
    %38 = vector.shape_cast %35 : vector<8x8xbf16> to vector<1x1x8x8xbf16>
    tpu.vector_store %arg10[%c0_28, %c1_29, %c0_30, %c0_31], %38 {strides = array<i32>} : memref<1x4x8x8xbf16, #tpu.memory_space<vmem>>, vector<1x1x8x8xbf16>,
    %39 = vector.extract_strided_slice %30 {offsets = [0, 16], sizes = [8, 8], strides = [1, 1]} : vector<8x32xbf16> to vector<8x8xbf16>
    %c0_32 = arith.constant 0 : index
    %c2_33 = arith.constant 2 : index
    %c0_34 = arith.constant 0 : index
    %c0_35 = arith.constant 0 : index
    %40 = vector.load %arg10[%c0_32, %c2_33, %c0_34, %c0_35] : memref<1x4x8x8xbf16, #tpu.memory_space<vmem>>, vector<1x1x8x8xbf16>
    %41 = vector.shape_cast %40 : vector<1x1x8x8xbf16> to vector<8x8xbf16>
    %42 = vector.shape_cast %39 : vector<8x8xbf16> to vector<1x1x8x8xbf16>
    tpu.vector_store %arg10[%c0_32, %c2_33, %c0_34, %c0_35], %42 {strides = array<i32>} : memref<1x4x8x8xbf16, #tpu.memory_space<vmem>>, vector<1x1x8x8xbf16>,
    %43 = vector.extract_strided_slice %30 {offsets = [0, 24], sizes = [8, 8], strides = [1, 1]} : vector<8x32xbf16> to vector<8x8xbf16>
    %c0_36 = arith.constant 0 : index
    %c3_37 = arith.constant 3 : index
    %c0_38 = arith.constant 0 : index
    %c0_39 = arith.constant 0 : index
    %44 = vector.load %arg10[%c0_36, %c3_37, %c0_38, %c0_39] : memref<1x4x8x8xbf16, #tpu.memory_space<vmem>>, vector<1x1x8x8xbf16>
    %45 = vector.shape_cast %44 : vector<1x1x8x8xbf16> to vector<8x8xbf16>
    %46 = vector.shape_cast %43 : vector<8x8xbf16> to vector<1x1x8x8xbf16>
    tpu.vector_store %arg10[%c0_36, %c3_37, %c0_38, %c0_39], %46 {strides = array<i32>} : memref<1x4x8x8xbf16, #tpu.memory_space<vmem>>, vector<1x1x8x8xbf16>,
    %c0_40 = arith.constant 0 : index
    %c0_41 = arith.constant 0 : index
    %47 = vector.load %arg5[%c0_40, %c0_41] : memref<32x32xbf16, #tpu.memory_space<vmem>>, vector<32x32xbf16>
    %cst_42 = arith.constant dense<0.000000e+00> : vector<8x32xf32>
    %48 = tpu.matmul %2, %47, %cst_42 {dimension_numbers = #tpu.dot_dimension_numbers<[1], [0], [0], [1], [0, 0, 1, 1], [], []>} : vector<8x32xbf16>, vector<32x32xbf16>, vector<8x32xf32> -> vector<8x32xf32>
    %c0_43 = arith.constant 0 : index
    %c0_44 = arith.constant 0 : index
    %49 = vector.load %arg8[%c0_43, %c0_44] : memref<1x32xf32, #tpu.memory_space<vmem>>, vector<1x32xf32>
    %50 = vector.broadcast %49 : vector<1x32xf32> to vector<8x32xf32>
    %51 = arith.addf %48, %50 : vector<8x32xf32>
    %52 = arith.truncf %51 : vector<8x32xf32> to vector<8x32xbf16>
    %53 = vector.extract_strided_slice %52 {offsets = [0, 0], sizes = [8, 8], strides = [1, 1]} : vector<8x32xbf16> to vector<8x8xbf16>
    %c0_45 = arith.constant 0 : index
    %c0_46 = arith.constant 0 : index
    %c0_47 = arith.constant 0 : index
    %c0_48 = arith.constant 0 : index
    %54 = vector.load %arg11[%c0_45, %c0_46, %c0_47, %c0_48] : memref<1x4x8x8xbf16, #tpu.memory_space<vmem>>, vector<1x1x8x8xbf16>
    %55 = vector.shape_cast %54 : vector<1x1x8x8xbf16> to vector<8x8xbf16>
    %56 = vector.shape_cast %53 : vector<8x8xbf16> to vector<1x1x8x8xbf16>
    tpu.vector_store %arg11[%c0_45, %c0_46, %c0_47, %c0_48], %56 {strides = array<i32>} : memref<1x4x8x8xbf16, #tpu.memory_space<vmem>>, vector<1x1x8x8xbf16>,
    %57 = vector.extract_strided_slice %52 {offsets = [0, 8], sizes = [8, 8], strides = [1, 1]} : vector<8x32xbf16> to vector<8x8xbf16>
    %c0_49 = arith.constant 0 : index
    %c1_50 = arith.constant 1 : index
    %c0_51 = arith.constant 0 : index
    %c0_52 = arith.constant 0 : index
    %58 = vector.load %arg11[%c0_49, %c1_50, %c0_51, %c0_52] : memref<1x4x8x8xbf16, #tpu.memory_space<vmem>>, vector<1x1x8x8xbf16>
    %59 = vector.shape_cast %58 : vector<1x1x8x8xbf16> to vector<8x8xbf16>
    %60 = vector.shape_cast %57 : vector<8x8xbf16> to vector<1x1x8x8xbf16>
    tpu.vector_store %arg11[%c0_49, %c1_50, %c0_51, %c0_52], %60 {strides = array<i32>} : memref<1x4x8x8xbf16, #tpu.memory_space<vmem>>, vector<1x1x8x8xbf16>,
    %61 = vector.extract_strided_slice %52 {offsets = [0, 16], sizes = [8, 8], strides = [1, 1]} : vector<8x32xbf16> to vector<8x8xbf16>
    %c0_53 = arith.constant 0 : index
    %c2_54 = arith.constant 2 : index
    %c0_55 = arith.constant 0 : index
    %c0_56 = arith.constant 0 : index
    %62 = vector.load %arg11[%c0_53, %c2_54, %c0_55, %c0_56] : memref<1x4x8x8xbf16, #tpu.memory_space<vmem>>, vector<1x1x8x8xbf16>
    %63 = vector.shape_cast %62 : vector<1x1x8x8xbf16> to vector<8x8xbf16>
    %64 = vector.shape_cast %61 : vector<8x8xbf16> to vector<1x1x8x8xbf16>
    tpu.vector_store %arg11[%c0_53, %c2_54, %c0_55, %c0_56], %64 {strides = array<i32>} : memref<1x4x8x8xbf16, #tpu.memory_space<vmem>>, vector<1x1x8x8xbf16>,
    %65 = vector.extract_strided_slice %52 {offsets = [0, 24], sizes = [8, 8], strides = [1, 1]} : vector<8x32xbf16> to vector<8x8xbf16>
    %c0_57 = arith.constant 0 : index
    %c3_58 = arith.constant 3 : index
    %c0_59 = arith.constant 0 : index
    %c0_60 = arith.constant 0 : index
    %66 = vector.load %arg11[%c0_57, %c3_58, %c0_59, %c0_60] : memref<1x4x8x8xbf16, #tpu.memory_space<vmem>>, vector<1x1x8x8xbf16>
    %67 = vector.shape_cast %66 : vector<1x1x8x8xbf16> to vector<8x8xbf16>
    %68 = vector.shape_cast %65 : vector<8x8xbf16> to vector<1x1x8x8xbf16>
    tpu.vector_store %arg11[%c0_57, %c3_58, %c0_59, %c0_60], %68 {strides = array<i32>} : memref<1x4x8x8xbf16, #tpu.memory_space<vmem>>, vector<1x1x8x8xbf16>,
    return
  }
  func.func @transform_0(%arg0: i32, %arg1: i32) -> (i32, i32, i32) {
    %c0_i32 = arith.constant 0 : i32
    %c0_i32_0 = arith.constant 0 : i32
    return %arg0, %arg1, %c0_i32 : i32, i32, i32
  }
  func.func @transform_1(%arg0: i32, %arg1: i32) -> (i32, i32) {
    %c0_i32 = arith.constant 0 : i32
    %c0_i32_0 = arith.constant 0 : i32
    %c0_i32_1 = arith.constant 0 : i32
    return %c0_i32, %c0_i32_0 : i32, i32
  }
  func.func @transform_2(%arg0: i32, %arg1: i32) -> (i32, i32) {
    %c0_i32 = arith.constant 0 : i32
    %c0_i32_0 = arith.constant 0 : i32
    %c0_i32_1 = arith.constant 0 : i32
    return %c0_i32, %c0_i32_0 : i32, i32
  }
  func.func @transform_3(%arg0: i32, %arg1: i32) -> (i32, i32) {
    %c0_i32 = arith.constant 0 : i32
    %c0_i32_0 = arith.constant 0 : i32
    %c0_i32_1 = arith.constant 0 : i32
    return %c0_i32, %c0_i32_0 : i32, i32
  }
  func.func @transform_4(%arg0: i32, %arg1: i32) -> (i32, i32) {
    %c0_i32 = arith.constant 0 : i32
    %c0_i32_0 = arith.constant 0 : i32
    %c0_i32_1 = arith.constant 0 : i32
    return %c0_i32, %c0_i32_0 : i32, i32
  }
  func.func @transform_5(%arg0: i32, %arg1: i32) -> (i32, i32) {
    %c0_i32 = arith.constant 0 : i32
    %c0_i32_0 = arith.constant 0 : i32
    %c0_i32_1 = arith.constant 0 : i32
    return %c0_i32, %c0_i32_0 : i32, i32
  }
  func.func @transform_6(%arg0: i32, %arg1: i32) -> (i32, i32) {
    %c0_i32 = arith.constant 0 : i32
    %c0_i32_0 = arith.constant 0 : i32
    %c0_i32_1 = arith.constant 0 : i32
    return %c0_i32, %c0_i32_0 : i32, i32
  }
  func.func @transform_7(%arg0: i32, %arg1: i32) -> (i32, i32, i32, i32) {
    %c0_i32 = arith.constant 0 : i32
    %c0_i32_0 = arith.constant 0 : i32
    %c0_i32_1 = arith.constant 0 : i32
    return %arg0, %c0_i32, %arg1, %c0_i32_0 : i32, i32, i32, i32
  }
  func.func @transform_8(%arg0: i32, %arg1: i32) -> (i32, i32, i32, i32) {
    %c0_i32 = arith.constant 0 : i32
    %c0_i32_0 = arith.constant 0 : i32
    %c0_i32_1 = arith.constant 0 : i32
    return %arg0, %c0_i32, %arg1, %c0_i32_0 : i32, i32, i32, i32
  }
  func.func @transform_9(%arg0: i32, %arg1: i32) -> (i32, i32, i32, i32) {
    %c0_i32 = arith.constant 0 : i32
    %c0_i32_0 = arith.constant 0 : i32
    %c0_i32_1 = arith.constant 0 : i32
    return %arg0, %c0_i32, %arg1, %c0_i32_0 : i32, i32, i32, i32
  }
}

</mosaic_0001>

<llo_original>
// kernel: tpu_custom_call.1
$region0: #{tpu_custom_call.1}
  #allocation0 [shape = 'u32[]', space=smem, size = 0x4, offset = 0x4, fixed_abs, tag = 'smem constant byte address 0x4 - core index']
  #allocation1 [shape = 'u32[72,128]{1,0:T(1,128)}', space=vmem, size = 0x9000, scoped, tag = 'internal scratch']
  %s0 = inlined_call_operand.hbm [shape: f32[2,8,32], index: 0, kind: input, shape index: {}]
  %s1 = inlined_call_operand.hbm [shape: bf16[32,32], index: 1, kind: input, shape index: {}]
  %s2 = inlined_call_operand.hbm [shape: bf16[32,32], index: 2, kind: input, shape index: {}]
  %s3 = inlined_call_operand.hbm [shape: bf16[32,32], index: 3, kind: input, shape index: {}]
  %s4 = inlined_call_operand.vmem [shape: f32[1,32], index: 4, kind: input, shape index: {}]
  %s5 = inlined_call_operand.vmem [shape: f32[1,32], index: 5, kind: input, shape index: {}]
  %s6 = inlined_call_operand.vmem [shape: f32[1,32], index: 6, kind: input, shape index: {}]
  %s7 = inlined_call_operand.hbm [shape: bf16[2,4,8,8], index: 7, kind: output, shape index: {0}]
  %s8 = inlined_call_operand.hbm [shape: bf16[2,4,8,8], index: 8, kind: output, shape index: {1}]
  %s9 = inlined_call_operand.hbm [shape: bf16[2,4,8,8], index: 9, kind: output, shape index: {2}]
  %10 = xla_tuple %s7, %s8, %s9
  %s11 = sld [smem:[#allocation0]]
  $region93: #{tpu_custom_call.1} parent=0
    _
  %s13 = ssub.s32 1, %s11
  %s14 = scalar_select 0, %s13, %s11
  $region1: #{tpu_custom_call.1} parent=0
    #allocation2 [shape = 'u8[8192]{0}', space=vmem, size = 0x2000, scoped, tag = 'input window, operand 0']
    #allocation3 [shape = 's32[2]{0}', space=sflag, size = 0x8, scoped, tag = 'scoped memory for tpu_custom_call.1']
    #allocation4 [shape = 's32[2]{0}', space=sflag, size = 0x8, scoped, tag = 'scoped memory for tpu_custom_call.1']
    #allocation5 [shape = 'u8[8192]{0}', space=vmem, size = 0x2000, scoped, tag = 'input window, operand 1, single buffered']
    #allocation6 [shape = 's32[1]{0}', space=sflag, size = 0x4, scoped, tag = 'scoped memory for tpu_custom_call.1']
    #allocation7 [shape = 'u8[8192]{0}', space=vmem, size = 0x2000, scoped, tag = 'input window, operand 2, single buffered']
    #allocation8 [shape = 'u8[8192]{0}', space=vmem, size = 0x2000, scoped, tag = 'input window, operand 3, single buffered']
    #allocation9 [shape = 's32[1]{0}', space=sflag, size = 0x4, scoped, tag = 'scoped memory for tpu_custom_call.1']
    #allocation10 [shape = 'u8[16384]{0}', space=vmem, size = 0x4000, scoped, tag = 'output window, operand 0']
    #allocation11 [shape = 'u8[16384]{0}', space=vmem, size = 0x4000, scoped, tag = 'output window, operand 1']
    #allocation12 [shape = 's32[2]{0}', space=sflag, size = 0x8, scoped, tag = 'scoped memory for tpu_custom_call.1']
    #allocation13 [shape = 'u8[16384]{0}', space=vmem, size = 0x4000, scoped, tag = 'output window, operand 2']
    %15 = vsyncpa [#allocation3], 0
    %s16 = scalar_lea.sflag [#allocation3], 1
    %17 = vsyncpa %s16, 0
    %18 = vsyncpa [#allocation6], 0
    %19 = vsyncpa [#allocation9], 0
    %20 = vsyncpa [#allocation4], 0
    %s21 = scalar_lea.sflag [#allocation4], 1
    %22 = vsyncpa %s21, 0
    %23 = vsyncpa [#allocation12], 0
    %s24 = scalar_lea.sflag [#allocation12], 1
    %25 = vsyncpa %s24, 0
    loop: start=0, step=1, limit=4
    $region2: #{tpu_custom_call.1} parent=1 // loop_pre_header
      _
    $region3: #{tpu_custom_call.1} parent=1 // loop_header
      %s27 = sphi 0, %s31
      %p28 = scmp.ge.s32.totalorder %s27, 4
      %s34 = sphi 0, %s46
      %s35 = sphi 0, %s42
      %s36 = sphi 0, %s34
      %s37 = sphi 0, %s35
      %s38 = sphi 0, %s36
      %s39 = sphi 0, %s37
      %s51 = sphi 0, %s53
      %s54 = sphi 0, %s51
      %s55 = sphi 0, %s54
      %s71 = sphi 0, %s55
      %s75 = sphi 0, %s75
      %s77 = sphi 0, %s75
      %s78 = sphi 0, %s77
      %s92 = sphi 0, %s78
      %s96 = sphi 0, %s96
      %s98 = sphi 0, %s96
      %s99 = sphi 0, %s98
      %s113 = sphi 0, %s99
      %s117 = sphi 0, %s117
      %s119 = sphi 0, %s117
      %s120 = sphi 0, %s119
      %s134 = sphi 0, %s120
      %s138 = sphi 0, %s138
      %s140 = sphi 0, %s138
      %s141 = sphi 0, %s140
      %s155 = sphi 0, %s141
      %s159 = sphi 0, %s159
      %s161 = sphi 0, %s159
      %s162 = sphi 0, %s161
      %s176 = sphi 0, %s162
      %s180 = sphi 0, %s180
      %s182 = sphi 0, %s180
      %s183 = sphi 0, %s182
      %s197 = sphi 0, %s183
      %s205 = sphi 0, %s207
      %s208 = sphi 0, %s205
      %s209 = sphi 0, %s208
      %s225 = sphi 0, %s209
      %s233 = sphi 0, %s235
      %s236 = sphi 0, %s233
      %s237 = sphi 0, %s236
      %s253 = sphi 0, %s237
      %s261 = sphi 0, %s263
      %s264 = sphi 0, %s261
      %s265 = sphi 0, %s264
      %s281 = sphi 0, %s265
    $region4: #{tpu_custom_call.1} parent=1 // loop_header_branch
      %30 = sbr.rel (%p28) target = $region8
    $region5: #{tpu_custom_call.1} parent=1 // loop_body
      %s32 = ssub.s32 %s27, 1
      %s33 = ssub.s32 %s27, 2
      %s40 = sadd.s32 1, %s35
      %p41 = scmp.ge.s32.totalorder %s40, 1
      %s42 = scalar_select %p41, 0, %s40
      %s43 = sadd.s32 1, %s34
      %s44 = scalar_select %p41, %s43, %s34
      %p45 = scmp.ge.s32.totalorder %s44, 2
      %s46 = scalar_select %p45, 0, %s44
      %s47 = ssub.s32 %s34, %s46
      %s48 = ssub.s32 %s35, %s42
      %s49 = sor.u32 %s47, %s48
      %p50 = scmp.eq.s32.totalorder %s49, 0
      %s52 = sadd.s32 %s51, 1
      %s53 = scalar_select %p50, %s51, %s52
      %p56 = pneg %p50
      %p57 = scmp.eq.s32.totalorder %s27, 1
      %p58 = por %p56, %p57
      %p59 = scmp.ne.s32.totalorder %s51, %s54
      %p60 = scmp.eq.s32.totalorder %s27, 0
      %p61 = por %p59, %p60
      %p62 = scmp.ne.s32.totalorder %s51, %s54
      %p63 = scmp.eq.s32.totalorder %s32, 1
      %p64 = por %p62, %p63
      %p65 = scmp.ne.s32.totalorder %s54, %s55
      %p66 = scmp.eq.s32.totalorder %s32, 0
      %p67 = por %p65, %p66
      %p68 = scmp.ne.s32.totalorder %s54, %s55
      %p69 = scmp.eq.s32.totalorder %s33, 1
      %p70 = por %p68, %p69
      %p72 = scmp.ne.s32.totalorder %s55, %s71
      %p73 = scmp.eq.s32.totalorder %s33, 0
      %p74 = por %p72, %p73
      %s76 = sadd.s32 %s75, 1
      %p79 = scmp.eq.s32.totalorder %s27, 1
      %p80 = scmp.ne.s32.totalorder %s75, %s77
      %p81 = scmp.eq.s32.totalorder %s27, 0
      %p82 = por %p80, %p81
      %p83 = scmp.ne.s32.totalorder %s75, %s77
      %p84 = scmp.eq.s32.totalorder %s32, 1
      %p85 = por %p83, %p84
      %p86 = scmp.ne.s32.totalorder %s77, %s78
      %p87 = scmp.eq.s32.totalorder %s32, 0
      %p88 = por %p86, %p87
      %p89 = scmp.ne.s32.totalorder %s77, %s78
      %p90 = scmp.eq.s32.totalorder %s33, 1
      %p91 = por %p89, %p90
      %p93 = scmp.ne.s32.totalorder %s78, %s92
      %p94 = scmp.eq.s32.totalorder %s33, 0
      %p95 = por %p93, %p94
      %s97 = sadd.s32 %s96, 1
      %p100 = scmp.eq.s32.totalorder %s27, 1
      %p101 = scmp.ne.s32.totalorder %s96, %s98
      %p102 = scmp.eq.s32.totalorder %s27, 0
      %p103 = por %p101, %p102
      %p104 = scmp.ne.s32.totalorder %s96, %s98
      %p105 = scmp.eq.s32.totalorder %s32, 1
      %p106 = por %p104, %p105
      %p107 = scmp.ne.s32.totalorder %s98, %s99
      %p108 = scmp.eq.s32.totalorder %s32, 0
      %p109 = por %p107, %p108
      %p110 = scmp.ne.s32.totalorder %s98, %s99
      %p111 = scmp.eq.s32.totalorder %s33, 1
      %p112 = por %p110, %p111
      %p114 = scmp.ne.s32.totalorder %s99, %s113
      %p115 = scmp.eq.s32.totalorder %s33, 0
      %p116 = por %p114, %p115
      %s118 = sadd.s32 %s117, 1
      %p121 = scmp.eq.s32.totalorder %s27, 1
      %p122 = scmp.ne.s32.totalorder %s117, %s119
      %p123 = scmp.eq.s32.totalorder %s27, 0
      %p124 = por %p122, %p123
      %p125 = scmp.ne.s32.totalorder %s117, %s119
      %p126 = scmp.eq.s32.totalorder %s32, 1
      %p127 = por %p125, %p126
      %p128 = scmp.ne.s32.totalorder %s119, %s120
      %p129 = scmp.eq.s32.totalorder %s32, 0
      %p130 = por %p128, %p129
      %p131 = scmp.ne.s32.totalorder %s119, %s120
      %p132 = scmp.eq.s32.totalorder %s33, 1
      %p133 = por %p131, %p132
      %p135 = scmp.ne.s32.totalorder %s120, %s134
      %p136 = scmp.eq.s32.totalorder %s33, 0
      %p137 = por %p135, %p136
      %s139 = sadd.s32 %s138, 1
      %p142 = scmp.eq.s32.totalorder %s27, 1
      %p143 = scmp.ne.s32.totalorder %s138, %s140
      %p144 = scmp.eq.s32.totalorder %s27, 0
      %p145 = por %p143, %p144
      %p146 = scmp.ne.s32.totalorder %s138, %s140
      %p147 = scmp.eq.s32.totalorder %s32, 1
      %p148 = por %p146, %p147
      %p149 = scmp.ne.s32.totalorder %s140, %s141
      %p150 = scmp.eq.s32.totalorder %s32, 0
      %p151 = por %p149, %p150
      %p152 = scmp.ne.s32.totalorder %s140, %s141
      %p153 = scmp.eq.s32.totalorder %s33, 1
      %p154 = por %p152, %p153
      %p156 = scmp.ne.s32.totalorder %s141, %s155
      %p157 = scmp.eq.s32.totalorder %s33, 0
      %p158 = por %p156, %p157
      %s160 = sadd.s32 %s159, 1
      %p163 = scmp.eq.s32.totalorder %s27, 1
      %p164 = scmp.ne.s32.totalorder %s159, %s161
      %p165 = scmp.eq.s32.totalorder %s27, 0
      %p166 = por %p164, %p165
      %p167 = scmp.ne.s32.totalorder %s159, %s161
      %p168 = scmp.eq.s32.totalorder %s32, 1
      %p169 = por %p167, %p168
      %p170 = scmp.ne.s32.totalorder %s161, %s162
      %p171 = scmp.eq.s32.totalorder %s32, 0
      %p172 = por %p170, %p171
      %p173 = scmp.ne.s32.totalorder %s161, %s162
      %p174 = scmp.eq.s32.totalorder %s33, 1
      %p175 = por %p173, %p174
      %p177 = scmp.ne.s32.totalorder %s162, %s176
      %p178 = scmp.eq.s32.totalorder %s33, 0
      %p179 = por %p177, %p178
      %s181 = sadd.s32 %s180, 1
      %p184 = scmp.eq.s32.totalorder %s27, 1
      %p185 = scmp.ne.s32.totalorder %s180, %s182
      %p186 = scmp.eq.s32.totalorder %s27, 0
      %p187 = por %p185, %p186
      %p188 = scmp.ne.s32.totalorder %s180, %s182
      %p189 = scmp.eq.s32.totalorder %s32, 1
      %p190 = por %p188, %p189
      %p191 = scmp.ne.s32.totalorder %s182, %s183
      %p192 = scmp.eq.s32.totalorder %s32, 0
      %p193 = por %p191, %p192
      %p194 = scmp.ne.s32.totalorder %s182, %s183
      %p195 = scmp.eq.s32.totalorder %s33, 1
      %p196 = por %p194, %p195
      %p198 = scmp.ne.s32.totalorder %s183, %s197
      %p199 = scmp.eq.s32.totalorder %s33, 0
      %p200 = por %p198, %p199
      %s201 = ssub.s32 %s34, %s46
      %s202 = ssub.s32 %s35, %s42
      %s203 = sor.u32 %s201, %s202
      %p204 = scmp.eq.s32.totalorder %s203, 0
      %s206 = sadd.s32 %s205, 1
      %s207 = scalar_select %p204, %s205, %s206
      %p210 = pneg %p204
      %p211 = scmp.eq.s32.totalorder %s27, 1
      %p212 = por %p210, %p211
      %p213 = scmp.ne.s32.totalorder %s205, %s208
      %p214 = scmp.eq.s32.totalorder %s27, 0
      %p215 = por %p213, %p214
      %p216 = scmp.ne.s32.totalorder %s205, %s208
      %p217 = scmp.eq.s32.totalorder %s32, 1
      %p218 = por %p216, %p217
      %p219 = scmp.ne.s32.totalorder %s208, %s209
      %p220 = scmp.eq.s32.totalorder %s32, 0
      %p221 = por %p219, %p220
      %p222 = scmp.ne.s32.totalorder %s208, %s209
      %p223 = scmp.eq.s32.totalorder %s33, 1
      %p224 = por %p222, %p223
      %p226 = scmp.ne.s32.totalorder %s209, %s225
      %p227 = scmp.eq.s32.totalorder %s33, 0
      %p228 = por %p226, %p227
      %s229 = ssub.s32 %s34, %s46
      %s230 = ssub.s32 %s35, %s42
      %s231 = sor.u32 %s229, %s230
      %p232 = scmp.eq.s32.totalorder %s231, 0
      %s234 = sadd.s32 %s233, 1
      %s235 = scalar_select %p232, %s233, %s234
      %p238 = pneg %p232
      %p239 = scmp.eq.s32.totalorder %s27, 1
      %p240 = por %p238, %p239
      %p241 = scmp.ne.s32.totalorder %s233, %s236
      %p242 = scmp.eq.s32.totalorder %s27, 0
      %p243 = por %p241, %p242
      %p244 = scmp.ne.s32.totalorder %s233, %s236
      %p245 = scmp.eq.s32.totalorder %s32, 1
      %p246 = por %p244, %p245
      %p247 = scmp.ne.s32.totalorder %s236, %s237
      %p248 = scmp.eq.s32.totalorder %s32, 0
      %p249 = por %p247, %p248
      %p250 = scmp.ne.s32.totalorder %s236, %s237
      %p251 = scmp.eq.s32.totalorder %s33, 1
      %p252 = por %p250, %p251
      %p254 = scmp.ne.s32.totalorder %s237, %s253
      %p255 = scmp.eq.s32.totalorder %s33, 0
      %p256 = por %p254, %p255
      %s257 = ssub.s32 %s34, %s46
      %s258 = ssub.s32 %s35, %s42
      %s259 = sor.u32 %s257, %s258
      %p260 = scmp.eq.s32.totalorder %s259, 0
      %s262 = sadd.s32 %s261, 1
      %s263 = scalar_select %p260, %s261, %s262
      %p266 = pneg %p260
      %p267 = scmp.eq.s32.totalorder %s27, 1
      %p268 = por %p266, %p267
      %p269 = scmp.ne.s32.totalorder %s261, %s264
      %p270 = scmp.eq.s32.totalorder %s27, 0
      %p271 = por %p269, %p270
      %p272 = scmp.ne.s32.totalorder %s261, %s264
      %p273 = scmp.eq.s32.totalorder %s32, 1
      %p274 = por %p272, %p273
      %p275 = scmp.ne.s32.totalorder %s264, %s265
      %p276 = scmp.eq.s32.totalorder %s32, 0
      %p277 = por %p275, %p276
      %p278 = scmp.ne.s32.totalorder %s264, %s265
      %p279 = scmp.eq.s32.totalorder %s33, 1
      %p280 = por %p278, %p279
      %p282 = scmp.ne.s32.totalorder %s265, %s281
      %p283 = scmp.eq.s32.totalorder %s33, 0
      %p284 = por %p282, %p283
      %p285 = scmp.le.s32.totalorder 1, %s27
      %p286 = scmp.lt.s32.totalorder %s27, 3
      %p287 = pnand %p285, %p286
      %p288 = pneg %p287
      // Predicated region
      $region9: #{tpu_custom_call.1} parent=5 // pred_check
        _
      $region10: #{tpu_custom_call.1} parent=5 // pred_check_branch
        %290 = sbr.rel (%p287) target = $region12
      $region11: #{tpu_custom_call.1} parent=5 // pred_region
        %s291 = ssub.s32 %s27, 1
        // Predicated region
        $region13: #{tpu_custom_call.1} parent=11 // pred_check
          %p292 = pneg %p88
        $region14: #{tpu_custom_call.1} parent=11 // pred_check_branch
          %294 = sbr.rel (%p292) target = $region16
        $region15: #{tpu_custom_call.1} parent=11 // pred_region
          %296 = vsyncadd [#allocation6], 0
          %s297 = sshll.u32 %s1, 4
          %s298 = int_to_ptr.hbm [resolvable:$true] %s297
          %s299 = sshll.u32 [#allocation5], 4
          %s300 = int_to_ptr.vmem [resolvable:$true] %s299
          %305 = dma.hbm_to_vmem [thread:$0]  %s298, 256, %s300, [#allocation6], 64, 64, 4
        $region16: #{tpu_custom_call.1} parent=11 // pred_fallthru
          _
        // Predicated region
        $region17: #{tpu_custom_call.1} parent=11 // pred_check
          %p306 = pneg %p109
        $region18: #{tpu_custom_call.1} parent=11 // pred_check_branch
          %308 = sbr.rel (%p306) target = $region20
        $region19: #{tpu_custom_call.1} parent=11 // pred_region
          %310 = vsyncadd [#allocation6], 0
          %s311 = sshll.u32 %s2, 4
          %s312 = int_to_ptr.hbm [resolvable:$true] %s311
          %s313 = sshll.u32 [#allocation7], 4
          %s314 = int_to_ptr.vmem [resolvable:$true] %s313
          %319 = dma.hbm_to_vmem [thread:$0]  %s312, 256, %s314, [#allocation6], 64, 64, 4
        $region20: #{tpu_custom_call.1} parent=11 // pred_fallthru
          _
        // Predicated region
        $region21: #{tpu_custom_call.1} parent=11 // pred_check
          %p320 = pneg %p130
        $region22: #{tpu_custom_call.1} parent=11 // pred_check_branch
          %322 = sbr.rel (%p320) target = $region24
        $region23: #{tpu_custom_call.1} parent=11 // pred_region
          %324 = vsyncadd [#allocation9], 0
          %s325 = sshll.u32 %s3, 4
          %s326 = int_to_ptr.hbm [resolvable:$true] %s325
          %s327 = sshll.u32 [#allocation8], 4
          %s328 = int_to_ptr.vmem [resolvable:$true] %s327
          %333 = dma.hbm_to_vmem [thread:$0]  %s326, 256, %s328, [#allocation9], 64, 64, 4
        $region24: #{tpu_custom_call.1} parent=11 // pred_fallthru
          _
        // Predicated region
        $region25: #{tpu_custom_call.1} parent=11 // pred_check
          %p334 = pneg %p151
        $region26: #{tpu_custom_call.1} parent=11 // pred_check_branch
          %336 = sbr.rel (%p334) target = $region28
        $region27: #{tpu_custom_call.1} parent=11 // pred_region
          _
        $region28: #{tpu_custom_call.1} parent=11 // pred_fallthru
          _
        // Predicated region
        $region29: #{tpu_custom_call.1} parent=11 // pred_check
          %p337 = pneg %p172
        $region30: #{tpu_custom_call.1} parent=11 // pred_check_branch
          %339 = sbr.rel (%p337) target = $region32
        $region31: #{tpu_custom_call.1} parent=11 // pred_region
          _
        $region32: #{tpu_custom_call.1} parent=11 // pred_fallthru
          _
        // Predicated region
        $region33: #{tpu_custom_call.1} parent=11 // pred_check
          %p340 = pneg %p193
        $region34: #{tpu_custom_call.1} parent=11 // pred_check_branch
          %342 = sbr.rel (%p340) target = $region36
        $region35: #{tpu_custom_call.1} parent=11 // pred_region
          _
        $region36: #{tpu_custom_call.1} parent=11 // pred_fallthru
          _
      $region12: #{tpu_custom_call.1} parent=5 // pred_fallthru
        _
      %p343 = scmp.lt.s32.totalorder %s27, 2
      // Predicated region
      $region37: #{tpu_custom_call.1} parent=5 // pred_check
        %p344 = pneg %p343
      $region38: #{tpu_custom_call.1} parent=5 // pred_check_branch
        %346 = sbr.rel (%p344) target = $region40
      $region39: #{tpu_custom_call.1} parent=5 // pred_region
        // Predicated region
        $region41: #{tpu_custom_call.1} parent=39 // pred_check
          %p347 = pneg %p61
        $region42: #{tpu_custom_call.1} parent=39 // pred_check_branch
          %349 = sbr.rel (%p347) target = $region44
        $region43: #{tpu_custom_call.1} parent=39 // pred_region
          %s350 = sand.u32 %s51, 1
          %s351 = scalar_lea.sflag [#allocation3], %s350
          %s352 = sand.u32 %s51, 1
          %s353 = smul.addr %s352, 8
          %s354 = scalar_lea.vmem [#allocation2], %s353
          %356 = vsyncadd %s351, 0
          %s357 = sadd.s32 %s35, %s34
          %s358 = smul.addr %s357, 8
          %s359 = scalar_lea.hbm %s0, %s358
          %s361 = sshll.u32 %s359, 4
          %s362 = int_to_ptr.hbm [resolvable:$true] %s361
          %s363 = sshll.u32 %s354, 4
          %s364 = int_to_ptr.vmem [resolvable:$true] %s363
          %366 = dma.hbm_to_vmem [thread:$0]  %s362, 128, %s364, %s351
        $region44: #{tpu_custom_call.1} parent=39 // pred_fallthru
          _
      $region40: #{tpu_custom_call.1} parent=5 // pred_fallthru
        _
      %p367 = scmp.le.s32.totalorder 1, %s27
      %p368 = scmp.lt.s32.totalorder %s27, 3
      %p369 = pnand %p367, %p368
      %p370 = pneg %p369
      // Predicated region
      $region45: #{tpu_custom_call.1} parent=5 // pred_check
        _
      $region46: #{tpu_custom_call.1} parent=5 // pred_check_branch
        %372 = sbr.rel (%p369) target = $region48
      $region47: #{tpu_custom_call.1} parent=5 // pred_region
        %s373 = ssub.s32 %s27, 1
        %s374 = sand.u32 %s54, 1
        %s375 = scalar_lea.sflag [#allocation3], %s374
        %s376 = sand.u32 %s54, 1
        %s377 = smul.addr %s376, 8
        %s378 = scalar_lea.vmem [#allocation2], %s377
        // Predicated region
        $region49: #{tpu_custom_call.1} parent=47 // pred_check
          %p379 = pneg %p67
        $region50: #{tpu_custom_call.1} parent=47 // pred_check_branch
          %381 = sbr.rel (%p379) target = $region52
        $region51: #{tpu_custom_call.1} parent=47 // pred_region
          %383 = dma.done %s375, 128
        $region52: #{tpu_custom_call.1} parent=47 // pred_fallthru
          _
        // Predicated region
        $region53: #{tpu_custom_call.1} parent=47 // pred_check
          %p384 = pneg %p88
        $region54: #{tpu_custom_call.1} parent=47 // pred_check_branch
          %386 = sbr.rel (%p384) target = $region56
        $region55: #{tpu_custom_call.1} parent=47 // pred_region
          %388 = dma.done [#allocation6], 256
        $region56: #{tpu_custom_call.1} parent=47 // pred_fallthru
          _
        // Predicated region
        $region57: #{tpu_custom_call.1} parent=47 // pred_check
          %p389 = pneg %p109
        $region58: #{tpu_custom_call.1} parent=47 // pred_check_branch
          %391 = sbr.rel (%p389) target = $region60
        $region59: #{tpu_custom_call.1} parent=47 // pred_region
          %393 = dma.done [#allocation6], 256
        $region60: #{tpu_custom_call.1} parent=47 // pred_fallthru
          _
        // Predicated region
        $region61: #{tpu_custom_call.1} parent=47 // pred_check
          %p394 = pneg %p130
        $region62: #{tpu_custom_call.1} parent=47 // pred_check_branch
          %396 = sbr.rel (%p394) target = $region64
        $region63: #{tpu_custom_call.1} parent=47 // pred_region
          %398 = dma.done [#allocation9], 256
        $region64: #{tpu_custom_call.1} parent=47 // pred_fallthru
          _
        %s399 = sand.u32 %s54, 1
        %s400 = scalar_lea.sflag [#allocation3], %s399
        %s401 = sand.u32 %s54, 1
        %s402 = smul.addr %s401, 8
        %s403 = scalar_lea.vmem [#allocation2], %s402
        %p404 = pneg %p67
        %p405 = pneg %p64
        %p406 = pneg %p88
        %p407 = pneg %p85
        %p408 = pneg %p109
        %p409 = pneg %p106
        %p410 = pneg %p130
        %p411 = pneg %p127
        %p412 = pneg %p151
        %p413 = pneg %p148
        %p414 = pneg %p172
        %p415 = pneg %p169
        %p416 = pneg %p193
        %p417 = pneg %p190
        %p418 = pneg %p221
        %p419 = pneg %p218
        %s420 = sand.u32 %s208, 1
        %s421 = scalar_lea.sflag [#allocation4], %s420
        %s422 = sand.u32 %s208, 1
        %s423 = smul.addr %s422, 16
        %s424 = scalar_lea.vmem [#allocation10], %s423
        %p425 = pneg %p249
        %p426 = pneg %p246
        %s427 = sand.u32 %s32, 1
        %s428 = scalar_lea.sflag [#allocation12], %s427
        %s429 = sand.u32 %s236, 1
        %s430 = smul.addr %s429, 16
        %s431 = scalar_lea.vmem [#allocation11], %s430
        %p432 = pneg %p277
        %p433 = pneg %p274
        %s434 = sand.u32 %s32, 1
        %s435 = scalar_lea.sflag [#allocation12], %s434
        %s436 = sand.u32 %s264, 1
        %s437 = smul.addr %s436, 16
        %s438 = scalar_lea.vmem [#allocation13], %s437
        %v440 = vld [vmem:[%s378] sm:$0xff]
        %v441 = vpack.c.bf16 %v440, %v440
        %v442 = vld [vmem:[#allocation5] sm:$0xf]
        %v443 = vld [vmem:[#allocation5 + $0x4] sm:$0xf]
        %v444 = vld [vmem:[#allocation5 + $0x8] sm:$0xf]
        %v445 = vld [vmem:[#allocation5 + $0xc] sm:$0xf]
        %v446 = vld [vmem:[%s4] sm:$0x1]
        %v448 = vperm.slane %v446, 0
        %v454 = vunpack.c.l.b16 %v442
        %v455 = vunpack.c.l.b16 %v443
        %v456 = vunpack.c.l.b16 %v444
        %v457 = vunpack.c.l.b16 %v445
        %v458 = vpack.c.b16 %v455, %v454
        %v459 = vpack.c.b16 %v457, %v456
        %vm462 = vcmask 261120
        %v464 = vsel %vm462, %v441, 0
        %466 = vmatpush.bf16.msra.mxu0 0
        %467 = vmatpush.bf16.msra.mxu0 0
        %468 = vmatpush.bf16.msra.mxu0 0
        %469 = vmatpush.bf16.msra.mxu0 0
        %470 = vmatpush.bf16.msra.mxu0 0
        %471 = vmatpush.bf16.msra.mxu0 0
        %472 = vmatpush.bf16.msra.mxu0 %v459
        %473 = vmatpush.bf16.msra.mxu0 %v458
        %474 = vmatmul.bf16.gmra.mxu0 %v464
        %v475 = vpop.f32.mrf.mxu0
        %v476 = vadd.f32 %v448, %v475
        %v477 = vpop.f32.mrf.mxu0
        %478 = vdwg.mxu0
        %v479 = vpack.c.bf16 %v476, %v476
        %vm480 = vcmask 60416
        %481 = vst.msk [vmem:[%s424] sm:$0xf] %vm480, %v479
        %483 = vrot.lane.b32.xlu0 %v479, 120
        %v484 = vpop.permute.xlu0 %483
        %s486 = scalar_lea.vmem %s424, 4 [#allocation10]
        %487 = vst.msk [vmem:[%s486] sm:$0xf] %vm480, %v484
        %488 = vrot.lane.b32.xlu0 %v479, 112
        %v489 = vpop.permute.xlu0 %488
        %s491 = scalar_lea.vmem %s424, 8 [#allocation10]
        %492 = vst.msk [vmem:[%s491] sm:$0xf] %vm480, %v489
        %493 = vrot.lane.b32.xlu0 %v479, 104
        %v494 = vpop.permute.xlu0 %493
        %s496 = scalar_lea.vmem %s424, 12 [#allocation10]
        %497 = vst.msk [vmem:[%s496] sm:$0xf] %vm480, %v494
        %v498 = vld [vmem:[#allocation7] sm:$0xf]
        %v499 = vld [vmem:[#allocation7 + $0x4] sm:$0xf]
        %v500 = vld [vmem:[#allocation7 + $0x8] sm:$0xf]
        %v501 = vld [vmem:[#allocation7 + $0xc] sm:$0xf]
        %v502 = vld [vmem:[%s5] sm:$0x1]
        %v504 = vperm.slane %v502, 0
        %v510 = vunpack.c.l.b16 %v498
        %v511 = vunpack.c.l.b16 %v499
        %v512 = vunpack.c.l.b16 %v500
        %v513 = vunpack.c.l.b16 %v501
        %v514 = vpack.c.b16 %v511, %v510
        %v515 = vpack.c.b16 %v513, %v512
        %518 = vmatpush.bf16.msra.mxu0 0
        %519 = vmatpush.bf16.msra.mxu0 0
        %520 = vmatpush.bf16.msra.mxu0 0
        %521 = vmatpush.bf16.msra.mxu0 0
        %522 = vmatpush.bf16.msra.mxu0 0
        %523 = vmatpush.bf16.msra.mxu0 0
        %524 = vmatpush.bf16.msra.mxu0 %v515
        %525 = vmatpush.bf16.msra.mxu0 %v514
        %526 = vmatmul.bf16.gmra.mxu0 %v464
        %v527 = vpop.f32.mrf.mxu0
        %v528 = vadd.f32 %v504, %v527
        %v529 = vpop.f32.mrf.mxu0
        %530 = vdwg.mxu0
        %v531 = vpack.c.bf16 %v528, %v528
        %532 = vst.msk [vmem:[%s431] sm:$0xf] %vm480, %v531
        %534 = vrot.lane.b32.xlu0 %v531, 120
        %v535 = vpop.permute.xlu0 %534
        %s537 = scalar_lea.vmem %s431, 4 [#allocation11]
        %538 = vst.msk [vmem:[%s537] sm:$0xf] %vm480, %v535
        %539 = vrot.lane.b32.xlu0 %v531, 112
        %v540 = vpop.permute.xlu0 %539
        %s542 = scalar_lea.vmem %s431, 8 [#allocation11]
        %543 = vst.msk [vmem:[%s542] sm:$0xf] %vm480, %v540
        %544 = vrot.lane.b32.xlu0 %v531, 104
        %v545 = vpop.permute.xlu0 %544
        %s547 = scalar_lea.vmem %s431, 12 [#allocation11]
        %548 = vst.msk [vmem:[%s547] sm:$0xf] %vm480, %v545
        %v549 = vld [vmem:[#allocation8] sm:$0xf]
        %v550 = vld [vmem:[#allocation8 + $0x4] sm:$0xf]
        %v551 = vld [vmem:[#allocation8 + $0x8] sm:$0xf]
        %v552 = vld [vmem:[#allocation8 + $0xc] sm:$0xf]
        %v553 = vld [vmem:[%s6] sm:$0x1]
        %v555 = vperm.slane %v553, 0
        %v561 = vunpack.c.l.b16 %v549
        %v562 = vunpack.c.l.b16 %v550
        %v563 = vunpack.c.l.b16 %v551
        %v564 = vunpack.c.l.b16 %v552
        %v565 = vpack.c.b16 %v562, %v561
        %v566 = vpack.c.b16 %v564, %v563
        %569 = vmatpush.bf16.msra.mxu0 0
        %570 = vmatpush.bf16.msra.mxu0 0
        %571 = vmatpush.bf16.msra.mxu0 0
        %572 = vmatpush.bf16.msra.mxu0 0
        %573 = vmatpush.bf16.msra.mxu0 0
        %574 = vmatpush.bf16.msra.mxu0 0
        %575 = vmatpush.bf16.msra.mxu0 %v566
        %576 = vmatpush.bf16.msra.mxu0 %v565
        %577 = vmatmul.bf16.gmra.mxu0 %v464
        %v578 = vpop.f32.mrf.mxu0
        %v579 = vadd.f32 %v555, %v578
        %v580 = vpop.f32.mrf.mxu0
        %581 = vdwg.mxu0
        %v582 = vpack.c.bf16 %v579, %v579
        %583 = vst.msk [vmem:[%s438] sm:$0xf] %vm480, %v582
        %585 = vrot.lane.b32.xlu0 %v582, 120
        %v586 = vpop.permute.xlu0 %585
        %s588 = scalar_lea.vmem %s438, 4 [#allocation13]
        %589 = vst.msk [vmem:[%s588] sm:$0xf] %vm480, %v586
        %590 = vrot.lane.b32.xlu0 %v582, 112
        %v591 = vpop.permute.xlu0 %590
        %s593 = scalar_lea.vmem %s438, 8 [#allocation13]
        %594 = vst.msk [vmem:[%s593] sm:$0xf] %vm480, %v591
        %595 = vrot.lane.b32.xlu0 %v582, 104
        %v596 = vpop.permute.xlu0 %595
        %s598 = scalar_lea.vmem %s438, 12 [#allocation13]
        %599 = vst.msk [vmem:[%s598] sm:$0xf] %vm480, %v596
        %s600 = sand.u32 %s208, 1
        %s601 = scalar_lea.sflag [#allocation4], %s600
        %s602 = sand.u32 %s208, 1
        %s603 = smul.addr %s602, 16
        %s604 = scalar_lea.vmem [#allocation10], %s603
        %s605 = sand.u32 %s32, 1
        %s606 = scalar_lea.sflag [#allocation12], %s605
        %s607 = sand.u32 %s236, 1
        %s608 = smul.addr %s607, 16
        %s609 = scalar_lea.vmem [#allocation11], %s608
        %s610 = sand.u32 %s32, 1
        %s611 = scalar_lea.sflag [#allocation12], %s610
        %s612 = sand.u32 %s264, 1
        %s613 = smul.addr %s612, 16
        %s614 = scalar_lea.vmem [#allocation13], %s613
        // Predicated region
        $region65: #{tpu_custom_call.1} parent=47 // pred_check
          %p615 = pneg %p218
        $region66: #{tpu_custom_call.1} parent=47 // pred_check_branch
          %617 = sbr.rel (%p615) target = $region68
        $region67: #{tpu_custom_call.1} parent=47 // pred_region
          %619 = vsyncadd %s601, 0
          %s620 = smul.addr %s36, 4
          %s621 = sadd.s32 %s37, %s620
          %s622 = smul.addr %s621, 4
          %s623 = scalar_lea.hbm %s7, %s622
          %s624 = sshll.u32 %s604, 4
          %s625 = int_to_ptr.vmem [resolvable:$true] %s624
          %s626 = sshll.u32 %s623, 4
          %s627 = int_to_ptr.hbm [resolvable:$true] %s626
          %632 = dma.vmem_to_hbm [thread:$0]  %s625, 256, %s627, %s601, 64, 64, 4
        $region68: #{tpu_custom_call.1} parent=47 // pred_fallthru
          _
        // Predicated region
        $region69: #{tpu_custom_call.1} parent=47 // pred_check
          %p633 = pneg %p246
        $region70: #{tpu_custom_call.1} parent=47 // pred_check_branch
          %635 = sbr.rel (%p633) target = $region72
        $region71: #{tpu_custom_call.1} parent=47 // pred_region
          %637 = vsyncadd %s606, 0
          %s638 = smul.addr %s36, 4
          %s639 = sadd.s32 %s37, %s638
          %s640 = smul.addr %s639, 4
          %s641 = scalar_lea.hbm %s8, %s640
          %s642 = sshll.u32 %s609, 4
          %s643 = int_to_ptr.vmem [resolvable:$true] %s642
          %s644 = sshll.u32 %s641, 4
          %s645 = int_to_ptr.hbm [resolvable:$true] %s644
          %650 = dma.vmem_to_hbm [thread:$0]  %s643, 256, %s645, %s606, 64, 64, 4
        $region72: #{tpu_custom_call.1} parent=47 // pred_fallthru
          _
        // Predicated region
        $region73: #{tpu_custom_call.1} parent=47 // pred_check
          %p651 = pneg %p274
        $region74: #{tpu_custom_call.1} parent=47 // pred_check_branch
          %653 = sbr.rel (%p651) target = $region76
        $region75: #{tpu_custom_call.1} parent=47 // pred_region
          %655 = vsyncadd %s611, 0
          %s656 = smul.addr %s36, 4
          %s657 = sadd.s32 %s37, %s656
          %s658 = smul.addr %s657, 4
          %s659 = scalar_lea.hbm %s9, %s658
          %s660 = sshll.u32 %s614, 4
          %s661 = int_to_ptr.vmem [resolvable:$true] %s660
          %s662 = sshll.u32 %s659, 4
          %s663 = int_to_ptr.hbm [resolvable:$true] %s662
          %668 = dma.vmem_to_hbm [thread:$0]  %s661, 256, %s663, %s611, 64, 64, 4
        $region76: #{tpu_custom_call.1} parent=47 // pred_fallthru
          _
      $region48: #{tpu_custom_call.1} parent=5 // pred_fallthru
        _
      %p669 = scmp.le.s32.totalorder 2, %s27
      // Predicated region
      $region77: #{tpu_custom_call.1} parent=5 // pred_check
        %p670 = pneg %p669
      $region78: #{tpu_custom_call.1} parent=5 // pred_check_branch
        %672 = sbr.rel (%p670) target = $region80
      $region79: #{tpu_custom_call.1} parent=5 // pred_region
        %s673 = ssub.s32 %s27, 2
        // Predicated region
        $region81: #{tpu_custom_call.1} parent=79 // pred_check
          %p674 = pneg %p224
        $region82: #{tpu_custom_call.1} parent=79 // pred_check_branch
          %676 = sbr.rel (%p674) target = $region84
        $region83: #{tpu_custom_call.1} parent=79 // pred_region
          %s677 = sand.u32 %s209, 1
          %s678 = scalar_lea.sflag [#allocation4], %s677
          %s679 = sand.u32 %s209, 1
          %s680 = smul.addr %s679, 16
          %s681 = scalar_lea.vmem [#allocation10], %s680
          %683 = dma.done %s678, 256
        $region84: #{tpu_custom_call.1} parent=79 // pred_fallthru
          _
        // Predicated region
        $region85: #{tpu_custom_call.1} parent=79 // pred_check
          %p684 = pneg %p252
        $region86: #{tpu_custom_call.1} parent=79 // pred_check_branch
          %686 = sbr.rel (%p684) target = $region88
        $region87: #{tpu_custom_call.1} parent=79 // pred_region
          %s687 = sand.u32 %s33, 1
          %s688 = scalar_lea.sflag [#allocation12], %s687
          %s689 = sand.u32 %s237, 1
          %s690 = smul.addr %s689, 16
          %s691 = scalar_lea.vmem [#allocation11], %s690
          %693 = dma.done %s688, 256
        $region88: #{tpu_custom_call.1} parent=79 // pred_fallthru
          _
        // Predicated region
        $region89: #{tpu_custom_call.1} parent=79 // pred_check
          %p694 = pneg %p280
        $region90: #{tpu_custom_call.1} parent=79 // pred_check_branch
          %696 = sbr.rel (%p694) target = $region92
        $region91: #{tpu_custom_call.1} parent=79 // pred_region
          %s697 = sand.u32 %s33, 1
          %s698 = scalar_lea.sflag [#allocation12], %s697
          %s699 = sand.u32 %s265, 1
          %s700 = smul.addr %s699, 16
          %s701 = scalar_lea.vmem [#allocation13], %s700
          %703 = dma.done %s698, 256
        $region92: #{tpu_custom_call.1} parent=79 // pred_fallthru
          _
      $region80: #{tpu_custom_call.1} parent=5 // pred_fallthru
        _
    $region6: #{tpu_custom_call.1} parent=1 // loop_footer
      %s31 = sadd.s32 1, %s27
    $region7: #{tpu_custom_call.1} parent=1 // loop_footer_branch
      %26 = sbr.rel target = $region3
    $region8: #{tpu_custom_call.1} parent=1 // loop_exit
      _
    %704 = vsyncpa [#allocation3], 1
    %s705 = scalar_lea.sflag [#allocation3], 1
    %706 = vsyncpa %s705, 1
    %707 = vsyncpa [#allocation6], 1
    %708 = vsyncpa [#allocation9], 1
    %709 = vsyncpa [#allocation4], 1
    %s710 = scalar_lea.sflag [#allocation4], 1
    %711 = vsyncpa %s710, 1
    %712 = vsyncpa [#allocation12], 1
    %s713 = scalar_lea.sflag [#allocation12], 1
    %714 = vsyncpa %s713, 1

</llo_original>
